<compile_context>
chip_gen: v6e
topology: v6e:2x2x1
jax: 0.10.0
libtpu: 0.0.40
codegen_flags: <defaults>
</compile_context>

<pallas_src>
import jax
import jax.numpy as jnp
from jax.experimental import pallas as pl
from jax.experimental.pallas import tpu as pltpu


def _encoder_rearrange_kernel(x_ref, a_ref, w_ref, b_ref, o_ref):
    """One batch tile per grid step.

    x_ref : (TB*C, TV)        f32   lane-dense stacked input  (TV = T*V)
    a_ref : (TV, TV)          bf16  block-diagonal adjacency  A_blk = I_T (x) adj
    w_ref : (TB*Co, TB*C)     f32   block-diagonal channel weight I_TB (x) W
    b_ref : (TB*Co, 1)        f32   bias column (tiled per batch element)
    o_ref : (TB*Co, TV)       bf16  output (reshaped to (B, Co*T, V) outside)
    """
    # Vertex aggregation on the MXU: bf16 operands, f32 accumulation.
    # x is cast to bf16 here (in-kernel), not in the wrapper.
    xb = x_ref[...].astype(a_ref.dtype)                                   # (TB*C, TV)
    z = jnp.dot(xb, a_ref[...], preferred_element_type=jnp.float32)       # (TB*C, TV) f32

    # Channel transform on the MXU (contraction depth TB*C is tiny -> keep f32).
    h = jnp.dot(w_ref[...], z, preferred_element_type=jnp.float32)        # (TB*Co, TV) f32

    # Bias + ReLU epilogue on the VPU; Dropout1d(p=ff_dropout) is identity
    # (eval mode / ff_dropout == 0.0).
    y = jnp.maximum(h + b_ref[...], 0.0)
    o_ref[...] = y.astype(o_ref.dtype)


def _detect_tensorcores_per_chip():
    """Best-effort megacore detection (v7x has 2 TensorCores per chip)."""
    try:
        kind = str(getattr(jax.devices()[0], "device_kind", "")).lower()
        if "v7" in kind:
            return 2
    except Exception:
        pass
    return 1


def _pick_batch_tile(B, C, Co, num_tensorcores=1):
    """Batch tile size.

    Single-TensorCore parts (v5e/v6e): one grid step (largest tile) -- extra
    grid steps are a serial loop with ~0.35 us fixed cost each and no payoff.
    Megacore parts (v7x): prefer a step count that is a multiple of the core
    count so no TensorCore idles on the last step, subject to the (8, 128)
    sublane constraint on the tiled x / output blocks.
    """
    if num_tensorcores <= 1:
        return B
    for tb in range(B - 1, 0, -1):
        if B % tb:
            continue
        steps = B // tb
        if steps % num_tensorcores:
            continue
        if (tb * C) % 8 or (tb * Co) % 8:
            continue  # tiled blocks must keep sublane dims a multiple of 8
        return tb
    return B  # fallback: single step (block == full array, always legal)


def build_frozen_encoder_operands(adj, w, bias, T, TB, matmul_dtype=jnp.bfloat16):
    """Precompute the grid-invariant kernel operands ONCE (encoder is frozen).

    Doing this per forward call would add an O((T*V)^2) XLA preamble that can
    rival the kernel itself at small shapes.
    """
    Co, C = w.shape
    # Block-diagonal adjacency I_T (x) adj: one lane-dense (TV, TV) MXU matmul
    # replaces T tiny (V, V) matmuls and any tile-crossing reshape.
    a_blk = jnp.kron(jnp.eye(T, dtype=jnp.float32), adj.astype(jnp.float32))
    a_blk = a_blk.astype(matmul_dtype)                                     # (TV, TV)
    # Block-diagonal channel transform I_TB (x) W: the whole batch tile becomes
    # a single M = TB*Co matmul.  Kept f32 (contraction depth is tiny).
    w_blk = jnp.kron(jnp.eye(TB, dtype=jnp.float32), w.astype(jnp.float32))  # (TB*Co, TB*C)
    bias_col = jnp.tile(bias.astype(jnp.float32).reshape(Co, 1), (TB, 1))    # (TB*Co, 1)
    return a_blk, w_blk, bias_col


def model_wrapper_forward(x, adj, w, bias, x_idx=None, cl_train=False,
                          out_dtype=jnp.bfloat16, matmul_dtype=jnp.bfloat16,
                          num_tensorcores=None, operands=None):
    """JAX/Pallas equivalent of ModelWrapper.forward for method='ours'.

    x_idx / cl_train only select behaviour inside the frozen encoder in the
    original code; they do not change the tuple_pos=0 tensor path here.
    """
    # TODO(synk): only the tuple_pos=0 (encoder-output) branch is implemented; the
    # codebook quantization internals producing the other tuple elements are not.
    B, C, T, V = x.shape
    Co = w.shape[0]
    TV = T * V

    if num_tensorcores is None:
        num_tensorcores = _detect_tensorcores_per_chip()
    TB = _pick_batch_tile(B, C, Co, num_tensorcores)

    if operands is None:
        operands = build_frozen_encoder_operands(adj, w, bias, T, TB, matmul_dtype)
    a_blk, w_blk, bias_col = operands

    # Lane-dense stacked input: free row-major reshape, NO wrapper-side cast
    # (the bf16 cast happens inside the kernel, right before the MXU dot).
    x_flat = x.reshape(B * C, TV)

    out = pl.pallas_call(
        _encoder_rearrange_kernel,
        out_shape=jax.ShapeDtypeStruct((B * Co, TV), out_dtype),
        grid_spec=pltpu.PrefetchScalarGridSpec(
            num_scalar_prefetch=0,
            grid=(B // TB,),
            in_specs=[
                pl.BlockSpec((TB * C, TV), lambda i: (i, 0)),        # stacked x
                pl.BlockSpec((TV, TV), lambda i: (0, 0)),            # I_T (x) adj
                pl.BlockSpec((TB * Co, TB * C), lambda i: (0, 0)),   # I_TB (x) W
                pl.BlockSpec((TB * Co, 1), lambda i: (0, 0)),        # bias column
            ],
            out_specs=pl.BlockSpec((TB * Co, TV), lambda i: (i, 0)),
        ),
        compiler_params=pltpu.CompilerParams(
            dimension_semantics=("parallel",)),
    )(x_flat, a_blk, w_blk, bias_col)

    # Free row-major reshapes:
    #   (B*Co, T*V) -> (B, Co, T, V) -> (B, Co*T, V)
    # which is exactly einops 'b c t v -> b (c t) v' on the 4-D encoder output.
    return out.reshape(B, Co, T, V).reshape(B, Co * T, V)


def _reference_forward(x, adj, w, bias):
    B, C, T, V = x.shape
    Co = w.shape[0]
    h = jnp.einsum('oc,bctu->botu', w, x)
    y = jnp.einsum('botu,uv->botv', h, adj) + bias[None, :, None, None]
    y = jnp.maximum(y, 0.0)
    return y.reshape(B, Co * T, V)   # einops 'b c t v -> b (c t) v'


if __name__ == "__main__":
    B, C, T, V, Co = 2, 4, 8, 16, 32

    key = jax.random.PRNGKey(0)
    kx, ka, kw, kb = jax.random.split(key, 4)

    x = jax.random.normal(kx, (B, C, T, V), dtype=jnp.float32)

    # deterministic symmetric, row-normalized adjacency shared across the batch
    a_raw = jax.random.uniform(ka, (V, V), dtype=jnp.float32)
    a_sym = (a_raw + a_raw.T) * 0.5 + jnp.eye(V, dtype=jnp.float32)
    adj = a_sym / jnp.sum(a_sym, axis=-1, keepdims=True)

    # deterministic frozen-encoder parameters
    w = jax.random.normal(kw, (Co, C), dtype=jnp.float32) * 0.1
    bias = jax.random.normal(kb, (Co,), dtype=jnp.float32) * 0.01

    x_idx = jnp.arange(B, dtype=jnp.int32)   # unused config args of the original forward
    cl_train = False

    # Precompute the frozen-encoder operands once (they never change).
    num_cores = _detect_tensorcores_per_chip()
    TB = _pick_batch_tile(B, C, Co, num_cores)
    operands = build_frozen_encoder_operands(adj, w, bias, T, TB)
    operands = jax.block_until_ready(operands)

    out = model_wrapper_forward(x, adj, w, bias, x_idx=x_idx, cl_train=cl_train,
                                num_tensorcores=num_cores, operands=operands)
    out = jax.block_until_ready(out)

    ref = _reference_forward(x, adj, w, bias)
    assert out.shape == (B, Co * T, V)
    # bf16 matmul operands / bf16 output with f32 accumulation -> loose tolerance
    assert jnp.allclose(out.astype(jnp.float32), ref, rtol=2e-2, atol=2e-2), \
        "kernel mismatch vs reference"

    print("KERNEL_OK")
</pallas_src>

<mosaic_0001>
module attributes {stable_mosaic.version = 11 : i64} {
  func.func @_encoder_rearrange_kernel(%arg0: i32, %arg1: memref<8x128xf32, #tpu.memory_space<vmem>>, %arg2: memref<128x128xbf16, #tpu.memory_space<vmem>>, %arg3: memref<64x8xf32, #tpu.memory_space<vmem>>, %arg4: memref<64x1xf32, #tpu.memory_space<vmem>>, %arg5: memref<64x128xbf16, #tpu.memory_space<vmem>>) attributes {dimension_semantics = [#tpu.dimension_semantics<parallel>], iteration_bounds = array<i64: 1>, scalar_prefetch = 0 : i64, scratch_operands = 0 : i64, tpu.core_type = #tpu.core_type<tc>, window_params = [{transform_indices = @transform_0, window_bounds = array<i64: 8, 128>}, {pipeline_mode = #tpu.pipeline_mode<synchronous>, transform_indices = @transform_1, window_bounds = array<i64: 128, 128>}, {pipeline_mode = #tpu.pipeline_mode<synchronous>, transform_indices = @transform_2, window_bounds = array<i64: 64, 8>}, {pipeline_mode = #tpu.pipeline_mode<synchronous>, transform_indices = @transform_3, window_bounds = array<i64: 64, 1>}, {transform_indices = @transform_4, window_bounds = array<i64: 64, 128>}]} {
    %c0 = arith.constant 0 : index
    %c0_0 = arith.constant 0 : index
    %0 = vector.load %arg1[%c0, %c0_0] : memref<8x128xf32, #tpu.memory_space<vmem>>, vector<8x128xf32>
    %1 = arith.truncf %0 : vector<8x128xf32> to vector<8x128xbf16>
    %c0_1 = arith.constant 0 : index
    %c0_2 = arith.constant 0 : index
    %2 = vector.load %arg2[%c0_1, %c0_2] : memref<128x128xbf16, #tpu.memory_space<vmem>>, vector<128x128xbf16>
    %cst = arith.constant dense<0.000000e+00> : vector<8x128xf32>
    %3 = tpu.matmul %1, %2, %cst {dimension_numbers = #tpu.dot_dimension_numbers<[1], [0], [0], [1], [0, 0, 1, 1], [], []>} : vector<8x128xbf16>, vector<128x128xbf16>, vector<8x128xf32> -> vector<8x128xf32>
    %c0_3 = arith.constant 0 : index
    %c0_4 = arith.constant 0 : index
    %4 = vector.load %arg3[%c0_3, %c0_4] : memref<64x8xf32, #tpu.memory_space<vmem>>, vector<64x8xf32>
    %cst_5 = arith.constant dense<0.000000e+00> : vector<64x128xf32>
    %5 = tpu.matmul %4, %3, %cst_5 {dimension_numbers = #tpu.dot_dimension_numbers<[1], [0], [0], [1], [0, 0, 1, 1], [], []>} : vector<64x8xf32>, vector<8x128xf32>, vector<64x128xf32> -> vector<64x128xf32>
    %c0_6 = arith.constant 0 : index
    %c0_7 = arith.constant 0 : index
    %6 = vector.load %arg4[%c0_6, %c0_7] : memref<64x1xf32, #tpu.memory_space<vmem>>, vector<64x1xf32>
    %7 = vector.broadcast %6 : vector<64x1xf32> to vector<64x128xf32>
    %8 = arith.addf %5, %7 : vector<64x128xf32>
    %cst_8 = arith.constant 0.000000e+00 : f32
    %9 = vector.broadcast %cst_8 : f32 to vector<64x128xf32>
    %10 = arith.maximumf %8, %9 : vector<64x128xf32>
    %11 = arith.truncf %10 : vector<64x128xf32> to vector<64x128xbf16>
    %c0_9 = arith.constant 0 : index
    %c0_10 = arith.constant 0 : index
    %12 = vector.load %arg5[%c0_9, %c0_10] : memref<64x128xbf16, #tpu.memory_space<vmem>>, vector<64x128xbf16>
    tpu.vector_store %arg5[%c0_9, %c0_10], %11 {strides = array<i32>} : memref<64x128xbf16, #tpu.memory_space<vmem>>, vector<64x128xbf16>,
    return
  }
  func.func @transform_0(%arg0: i32) -> (i32, i32) {
    %c0_i32 = arith.constant 0 : i32
    %c0_i32_0 = arith.constant 0 : i32
    return %arg0, %c0_i32 : i32, i32
  }
  func.func @transform_1(%arg0: i32) -> (i32, i32) {
    %c0_i32 = arith.constant 0 : i32
    %c0_i32_0 = arith.constant 0 : i32
    %c0_i32_1 = arith.constant 0 : i32
    return %c0_i32, %c0_i32_0 : i32, i32
  }
  func.func @transform_2(%arg0: i32) -> (i32, i32) {
    %c0_i32 = arith.constant 0 : i32
    %c0_i32_0 = arith.constant 0 : i32
    %c0_i32_1 = arith.constant 0 : i32
    return %c0_i32, %c0_i32_0 : i32, i32
  }
  func.func @transform_3(%arg0: i32) -> (i32, i32) {
    %c0_i32 = arith.constant 0 : i32
    %c0_i32_0 = arith.constant 0 : i32
    %c0_i32_1 = arith.constant 0 : i32
    return %c0_i32, %c0_i32_0 : i32, i32
  }
  func.func @transform_4(%arg0: i32) -> (i32, i32) {
    %c0_i32 = arith.constant 0 : i32
    %c0_i32_0 = arith.constant 0 : i32
    return %arg0, %c0_i32 : i32, i32
  }
}

</mosaic_0001>

<llo_original>
// kernel: tpu_custom_call.1
$region0: #{tpu_custom_call.1}
  #allocation0 [shape = 'u32[]', space=smem, size = 0x4, offset = 0x4, fixed_abs, tag = 'smem constant byte address 0x4 - core index']
  #allocation1 [shape = 'u32[144,128]{1,0:T(1,128)}', space=vmem, size = 0x12000, scoped, tag = 'internal scratch']
  %s0 = inlined_call_operand.vmem [shape: f32[8,128], index: 0, kind: input, shape index: {}]
  %s1 = inlined_call_operand.vmem [shape: bf16[128,128], index: 1, kind: input, shape index: {}]
  %s2 = inlined_call_operand.vmem [shape: f32[64,8], index: 2, kind: input, shape index: {}]
  %s3 = inlined_call_operand.vmem [shape: f32[64,1], index: 3, kind: input, shape index: {}]
  %s4 = inlined_call_operand.hbm [shape: bf16[64,128], index: 4, kind: output, shape index: {}]
  %s5 = sld [smem:[#allocation0]]
  $region26: #{tpu_custom_call.1} parent=0
    _
  %s7 = ssub.s32 1, %s5
  %s8 = scalar_select 0, %s7, %s5
  $region1: #{tpu_custom_call.1} parent=0
    #allocation2 [shape = 'u8[16384]{0}', space=vmem, size = 0x4000, scoped, tag = 'output window, operand 0, single buffered']
    #allocation3 [shape = 's32[1]{0}', space=sflag, size = 0x4, scoped, tag = 'scoped memory for tpu_custom_call.1']
    %9 = vsyncpa [#allocation3], 0
    // Predicated region
    $region2: #{tpu_custom_call.1} parent=1 // pred_check
      _
    $region3: #{tpu_custom_call.1} parent=1 // pred_check_branch
      %11 = sbr.rel (0) target = $region5
    $region4: #{tpu_custom_call.1} parent=1 // pred_region
      _
    $region5: #{tpu_custom_call.1} parent=1 // pred_fallthru
      _
    // Predicated region
    $region6: #{tpu_custom_call.1} parent=1 // pred_check
      _
    $region7: #{tpu_custom_call.1} parent=1 // pred_check_branch
      %13 = sbr.rel (0) target = $region9
    $region8: #{tpu_custom_call.1} parent=1 // pred_region
      _
    $region9: #{tpu_custom_call.1} parent=1 // pred_fallthru
      _
    // Predicated region
    $region10: #{tpu_custom_call.1} parent=1 // pred_check
      _
    $region11: #{tpu_custom_call.1} parent=1 // pred_check_branch
      %15 = sbr.rel (0) target = $region13
    $region12: #{tpu_custom_call.1} parent=1 // pred_region
      _
    $region13: #{tpu_custom_call.1} parent=1 // pred_fallthru
      _
    // Predicated region
    $region14: #{tpu_custom_call.1} parent=1 // pred_check
      _
    $region15: #{tpu_custom_call.1} parent=1 // pred_check_branch
      %17 = sbr.rel (0) target = $region17
    $region16: #{tpu_custom_call.1} parent=1 // pred_region
      _
    $region17: #{tpu_custom_call.1} parent=1 // pred_fallthru
      _
    %v19 = vld [vmem:[%s0] sm:$0xff]
    %v20 = vpack.c.bf16 %v19, %v19
    %v21 = vld [vmem:[%s1] sm:$0xf]
    %v22 = vld [vmem:[%s1 + $0x4] sm:$0xf]
    %v23 = vld [vmem:[%s1 + $0x8] sm:$0xf]
    %v24 = vld [vmem:[%s1 + $0xc] sm:$0xf]
    %v25 = vld [vmem:[%s1 + $0x10] sm:$0xf]
    %v26 = vld [vmem:[%s1 + $0x14] sm:$0xf]
    %v27 = vld [vmem:[%s1 + $0x18] sm:$0xf]
    %v28 = vld [vmem:[%s1 + $0x1c] sm:$0xf]
    %v29 = vld [vmem:[%s1 + $0x20] sm:$0xf]
    %v30 = vld [vmem:[%s1 + $0x24] sm:$0xf]
    %v31 = vld [vmem:[%s1 + $0x28] sm:$0xf]
    %v32 = vld [vmem:[%s1 + $0x2c] sm:$0xf]
    %v33 = vld [vmem:[%s1 + $0x30] sm:$0xf]
    %v34 = vld [vmem:[%s1 + $0x34] sm:$0xf]
    %v35 = vld [vmem:[%s1 + $0x38] sm:$0xf]
    %v36 = vld [vmem:[%s1 + $0x3c] sm:$0xf]
    %v53 = vunpack.c.l.b16 %v21
    %v54 = vunpack.c.l.b16 %v22
    %v55 = vunpack.c.l.b16 %v23
    %v56 = vunpack.c.l.b16 %v24
    %v57 = vunpack.c.l.b16 %v25
    %v58 = vunpack.c.l.b16 %v26
    %v59 = vunpack.c.l.b16 %v27
    %v60 = vunpack.c.l.b16 %v28
    %v61 = vunpack.c.l.b16 %v29
    %v62 = vunpack.c.l.b16 %v30
    %v63 = vunpack.c.l.b16 %v31
    %v64 = vunpack.c.l.b16 %v32
    %v65 = vunpack.c.l.b16 %v33
    %v66 = vunpack.c.l.b16 %v34
    %v67 = vunpack.c.l.b16 %v35
    %v68 = vunpack.c.l.b16 %v36
    %v69 = vpack.c.b16 %v54, %v53
    %v70 = vpack.c.b16 %v56, %v55
    %v71 = vpack.c.b16 %v58, %v57
    %v72 = vpack.c.b16 %v60, %v59
    %v73 = vpack.c.b16 %v62, %v61
    %v74 = vpack.c.b16 %v64, %v63
    %v75 = vpack.c.b16 %v66, %v65
    %v76 = vpack.c.b16 %v68, %v67
    %85 = vmatprep.subr.bf16.mxu0 0
    %86 = vmatpush1.bf16.msra.mxu0 %v76
    %87 = vmatprep.subr.bf16.mxu0 0
    %88 = vmatpush1.bf16.msra.mxu0 %v75
    %89 = vmatprep.subr.bf16.mxu0 0
    %90 = vmatpush1.bf16.msra.mxu0 %v74
    %91 = vmatprep.subr.bf16.mxu0 0
    %92 = vmatpush1.bf16.msra.mxu0 %v73
    %93 = vmatprep.subr.bf16.mxu0 0
    %94 = vmatpush1.bf16.msra.mxu0 %v72
    %95 = vmatprep.subr.bf16.mxu0 0
    %96 = vmatpush1.bf16.msra.mxu0 %v71
    %97 = vmatprep.subr.bf16.mxu0 0
    %98 = vmatpush1.bf16.msra.mxu0 %v70
    %99 = vmatprep.subr.bf16.mxu0 0
    %100 = vmatpush1.bf16.msra.mxu0 %v69
    %101 = vmatprep.subr.bf16.mxu0 0
    %102 = vmatpush2.bf16.msra.mxu0 0
    %103 = vmatprep.subr.bf16.mxu0 0
    %104 = vmatpush2.bf16.msra.mxu0 0
    %105 = vmatprep.subr.bf16.mxu0 0
    %106 = vmatpush2.bf16.msra.mxu0 0
    %107 = vmatprep.subr.bf16.mxu0 0
    %108 = vmatpush2.bf16.msra.mxu0 0
    %109 = vmatprep.subr.bf16.mxu0 0
    %110 = vmatpush2.bf16.msra.mxu0 0
    %111 = vmatprep.subr.bf16.mxu0 0
    %112 = vmatpush2.bf16.msra.mxu0 0
    %113 = vmatprep.subr.bf16.mxu0 0
    %114 = vmatpush2.bf16.msra.mxu0 0
    %115 = vmatprep.subr.bf16.mxu0 0
    %116 = vmatpush2.bf16.msra.mxu0 0
    %117 = vmatprep.mubr.bf16.mxu0 0
    %118 = vmatmul.mubr.bf16.gmra.mxu0 %v20
    %v119 = vpop.f32.mrf.mxu0
    %v120 = vadd.f32 0.0, %v119
    %v121 = vpop.f32.mrf.mxu0
    %v122 = vpop.f32.mrf.mxu0
    %v123 = vpop.f32.mrf.mxu0
    %124 = vdwg.mxu0
    %v125 = vld [vmem:[%s2] sm:$0xff]
    %v126 = vld [vmem:[%s2 + $0x8] sm:$0xff]
    %v127 = vld [vmem:[%s2 + $0x10] sm:$0xff]
    %v128 = vld [vmem:[%s2 + $0x18] sm:$0xff]
    %v129 = vld [vmem:[%s2 + $0x20] sm:$0xff]
    %v130 = vld [vmem:[%s2 + $0x28] sm:$0xff]
    %v131 = vld [vmem:[%s2 + $0x30] sm:$0xff]
    %v132 = vld [vmem:[%s2 + $0x38] sm:$0xff]
    %v133 = vld [vmem:[%s3] sm:$0xff]
    %v134 = vld [vmem:[%s3 + $0x8] sm:$0xff]
    %v135 = vld [vmem:[%s3 + $0x10] sm:$0xff]
    %v136 = vld [vmem:[%s3 + $0x18] sm:$0xff]
    %v137 = vld [vmem:[%s3 + $0x20] sm:$0xff]
    %v138 = vld [vmem:[%s3 + $0x28] sm:$0xff]
    %v139 = vld [vmem:[%s3 + $0x30] sm:$0xff]
    %v140 = vld [vmem:[%s3 + $0x38] sm:$0xff]
    %142 = vset.pattern.permute.xlu0 0
    %143 = vperm.xlu0 %142, %v133
    %v144 = vpop.permute.xlu0 %143
    %147 = vset.pattern.permute.xlu0 0
    %148 = vperm.xlu0 %147, %v134
    %v149 = vpop.permute.xlu0 %148
    %152 = vset.pattern.permute.xlu0 0
    %153 = vperm.xlu0 %152, %v135
    %v154 = vpop.permute.xlu0 %153
    %157 = vset.pattern.permute.xlu0 0
    %158 = vperm.xlu0 %157, %v136
    %v159 = vpop.permute.xlu0 %158
    %162 = vset.pattern.permute.xlu0 0
    %163 = vperm.xlu0 %162, %v137
    %v164 = vpop.permute.xlu0 %163
    %167 = vset.pattern.permute.xlu0 0
    %168 = vperm.xlu0 %167, %v138
    %v169 = vpop.permute.xlu0 %168
    %172 = vset.pattern.permute.xlu0 0
    %173 = vperm.xlu0 %172, %v139
    %v174 = vpop.permute.xlu0 %173
    %177 = vset.pattern.permute.xlu0 0
    %178 = vperm.xlu0 %177, %v140
    %v179 = vpop.permute.xlu0 %178
    %vm181 = vcmask 64512
    %v183 = vsel %vm181, %v125, 0
    %v186 = vsel %vm181, %v126, 0
    %v189 = vsel %vm181, %v127, 0
    %v192 = vsel %vm181, %v128, 0
    %v195 = vsel %vm181, %v129, 0
    %v198 = vsel %vm181, %v130, 0
    %v201 = vsel %vm181, %v131, 0
    %v204 = vsel %vm181, %v132, 0
    %206 = vmatprep.subr.mxu0 0.0
    %207 = vmatpush1.msra.mxu0 0.0
    %208 = vmatprep.subr.mxu0 0.0
    %209 = vmatpush1.msra.mxu0 0.0
    %210 = vmatprep.subr.mxu0 0.0
    %211 = vmatpush1.msra.mxu0 0.0
    %212 = vmatprep.subr.mxu0 0.0
    %213 = vmatpush1.msra.mxu0 0.0
    %214 = vmatprep.subr.mxu0 0.0
    %215 = vmatpush1.msra.mxu0 0.0
    %216 = vmatprep.subr.mxu0 0.0
    %217 = vmatpush1.msra.mxu0 0.0
    %218 = vmatprep.subr.mxu0 0.0
    %219 = vmatpush1.msra.mxu0 0.0
    %220 = vmatprep.subr.mxu0 0.0
    %221 = vmatpush1.msra.mxu0 0.0
    %222 = vmatprep.subr.mxu0 0.0
    %223 = vmatpush1.msra.mxu0 0.0
    %224 = vmatprep.subr.mxu0 0.0
    %225 = vmatpush1.msra.mxu0 0.0
    %226 = vmatprep.subr.mxu0 0.0
    %227 = vmatpush1.msra.mxu0 0.0
    %228 = vmatprep.subr.mxu0 0.0
    %229 = vmatpush1.msra.mxu0 0.0
    %230 = vmatprep.subr.mxu0 0.0
    %231 = vmatpush1.msra.mxu0 0.0
    %232 = vmatprep.subr.mxu0 0.0
    %233 = vmatpush1.msra.mxu0 0.0
    %234 = vmatprep.subr.mxu0 0.0
    %235 = vmatpush1.msra.mxu0 0.0
    %236 = vmatprep.subr.mxu0 0.0
    %237 = vmatpush1.msra.mxu0 %v120
    %238 = vmatprep.subr.mxu0 0.0
    %239 = vmatpush2.msra.mxu0 0.0
    %240 = vmatprep.subr.mxu0 0.0
    %241 = vmatpush2.msra.mxu0 0.0
    %242 = vmatprep.subr.mxu0 0.0
    %243 = vmatpush2.msra.mxu0 0.0
    %244 = vmatprep.subr.mxu0 0.0
    %245 = vmatpush2.msra.mxu0 0.0
    %246 = vmatprep.subr.mxu0 0.0
    %247 = vmatpush2.msra.mxu0 0.0
    %248 = vmatprep.subr.mxu0 0.0
    %249 = vmatpush2.msra.mxu0 0.0
    %250 = vmatprep.subr.mxu0 0.0
    %251 = vmatpush2.msra.mxu0 0.0
    %252 = vmatprep.subr.mxu0 0.0
    %253 = vmatpush2.msra.mxu0 0.0
    %254 = vmatprep.subr.mxu0 0.0
    %255 = vmatpush2.msra.mxu0 0.0
    %256 = vmatprep.subr.mxu0 0.0
    %257 = vmatpush2.msra.mxu0 0.0
    %258 = vmatprep.subr.mxu0 0.0
    %259 = vmatpush2.msra.mxu0 0.0
    %260 = vmatprep.subr.mxu0 0.0
    %261 = vmatpush2.msra.mxu0 0.0
    %262 = vmatprep.subr.mxu0 0.0
    %263 = vmatpush2.msra.mxu0 0.0
    %264 = vmatprep.subr.mxu0 0.0
    %265 = vmatpush2.msra.mxu0 0.0
    %266 = vmatprep.subr.mxu0 0.0
    %267 = vmatpush2.msra.mxu0 0.0
    %268 = vmatprep.subr.mxu0 0.0
    %269 = vmatpush2.msra.mxu0 0.0
    %270 = vmatprep.mubr.f32.mxu0 0.0
    %271 = vmatmul.mubr.f32.gmra.mxu0 %v183
    %v272 = vpop.f32.mrf.mxu0
    %v273 = vadd.f32 %v144, %v272
    %v274 = vpop.f32.mrf.mxu0
    %275 = vmatprep.mubr.f32.mxu0 0.0
    %276 = vmatmul.mubr.f32.gmra.mxu0 %v186
    %v277 = vpop.f32.mrf.mxu0
    %v278 = vadd.f32 %v149, %v277
    %v279 = vpop.f32.mrf.mxu0
    %280 = vmatprep.mubr.f32.mxu0 0.0
    %281 = vmatmul.mubr.f32.gmra.mxu0 %v189
    %v282 = vpop.f32.mrf.mxu0
    %v283 = vadd.f32 %v154, %v282
    %v284 = vpop.f32.mrf.mxu0
    %285 = vmatprep.mubr.f32.mxu0 0.0
    %286 = vmatmul.mubr.f32.gmra.mxu0 %v192
    %v287 = vpop.f32.mrf.mxu0
    %v288 = vadd.f32 %v159, %v287
    %v289 = vpop.f32.mrf.mxu0
    %290 = vmatprep.mubr.f32.mxu0 0.0
    %291 = vmatmul.mubr.f32.gmra.mxu0 %v195
    %v292 = vpop.f32.mrf.mxu0
    %v293 = vadd.f32 %v164, %v292
    %v294 = vpop.f32.mrf.mxu0
    %295 = vmatprep.mubr.f32.mxu0 0.0
    %296 = vmatmul.mubr.f32.gmra.mxu0 %v198
    %v297 = vpop.f32.mrf.mxu0
    %v298 = vadd.f32 %v169, %v297
    %v299 = vpop.f32.mrf.mxu0
    %300 = vmatprep.mubr.f32.mxu0 0.0
    %301 = vmatmul.mubr.f32.gmra.mxu0 %v201
    %v302 = vpop.f32.mrf.mxu0
    %v303 = vadd.f32 %v174, %v302
    %v304 = vpop.f32.mrf.mxu0
    %305 = vmatprep.mubr.f32.mxu0 0.0
    %306 = vmatmul.mubr.f32.gmra.mxu0 %v204
    %v307 = vpop.f32.mrf.mxu0
    %v308 = vadd.f32 %v179, %v307
    %v309 = vpop.f32.mrf.mxu0
    %310 = vdwg.mxu0
    %v311 = vmax.f32 %v273, 0.0
    %v312 = vmax.f32 %v278, 0.0
    %v313 = vmax.f32 %v283, 0.0
    %v314 = vmax.f32 %v288, 0.0
    %v315 = vmax.f32 %v293, 0.0
    %v316 = vmax.f32 %v298, 0.0
    %v317 = vmax.f32 %v303, 0.0
    %v318 = vmax.f32 %v308, 0.0
    %v319 = vpack.c.bf16 %v312, %v311
    %v320 = vpack.c.bf16 %v314, %v313
    %v321 = vpack.c.bf16 %v316, %v315
    %v322 = vpack.c.bf16 %v318, %v317
    %v327 = vunpack.c.l.b16 %v319
    %v328 = vunpack.c.h.b16 %v319
    %v329 = vunpack.c.l.b16 %v320
    %v330 = vunpack.c.h.b16 %v320
    %v331 = vunpack.c.l.b16 %v321
    %v332 = vunpack.c.h.b16 %v321
    %v333 = vunpack.c.l.b16 %v322
    %v334 = vunpack.c.h.b16 %v322
    %v335 = vpack.c.b16 %v327, %v327
    %v336 = vpack.c.b16 %v328, %v328
    %v337 = vpack.c.b16 %v329, %v329
    %v338 = vpack.c.b16 %v330, %v330
    %v339 = vpack.c.b16 %v331, %v331
    %v340 = vpack.c.b16 %v332, %v332
    %v341 = vpack.c.b16 %v333, %v333
    %v342 = vpack.c.b16 %v334, %v334
    %351 = vst [vmem:[#allocation2] sm:$0xf] %v335
    %352 = vst [vmem:[#allocation2 + $0x4] sm:$0xf] %v336
    %353 = vst [vmem:[#allocation2 + $0x8] sm:$0xf] %v337
    %354 = vst [vmem:[#allocation2 + $0xc] sm:$0xf] %v338
    %355 = vst [vmem:[#allocation2 + $0x10] sm:$0xf] %v339
    %356 = vst [vmem:[#allocation2 + $0x14] sm:$0xf] %v340
    %357 = vst [vmem:[#allocation2 + $0x18] sm:$0xf] %v341
    %358 = vst [vmem:[#allocation2 + $0x1c] sm:$0xf] %v342
    // Predicated region
    $region18: #{tpu_custom_call.1} parent=1 // pred_check
      _
    $region19: #{tpu_custom_call.1} parent=1 // pred_check_branch
      %360 = sbr.rel (0) target = $region21
    $region20: #{tpu_custom_call.1} parent=1 // pred_region
      %s362 = ssub.s32 512, 512
      %363 = vsyncadd [#allocation3], %s362
      %s364 = sshll.u32 [#allocation2], 4
      %s365 = int_to_ptr.vmem [resolvable:$true] %s364
      %370 = dma.vmem_to_hbm [thread:$0]  %s365, 512, %s4, [#allocation3], 64, 64, 4
    $region21: #{tpu_custom_call.1} parent=1 // pred_fallthru
      _
    // Predicated region
    $region22: #{tpu_custom_call.1} parent=1 // pred_check
      _
    $region23: #{tpu_custom_call.1} parent=1 // pred_check_branch
      %372 = sbr.rel (0) target = $region25
    $region24: #{tpu_custom_call.1} parent=1 // pred_region
      %373 = dma.done [#allocation3], 512
    $region25: #{tpu_custom_call.1} parent=1 // pred_fallthru
      _
    %374 = vsyncpa [#allocation3], 1

</llo_original>
